<compile_context>
chip_gen: v7x
topology: tpu7x:2x2x1
jax: 0.10.0
libtpu: 0.0.40
codegen_flags: <defaults>
</compile_context>

<pallas_src>
import jax
import jax.numpy as jnp
from jax.experimental import pallas as pl
from jax.experimental.pallas import tpu as pltpu

LANE = 128
SUBLANE = 8


def _round_up(n: int, m: int) -> int:
    return ((n + m - 1) // m) * m


def _vmem_capacity_bytes() -> int:
    """Best-effort per-core VMEM capacity; falls back to the v7x (smallest) size."""
    try:
        info = pltpu.get_tpu_info()
        for name in ("vmem_capacity_bytes", "vmem_size_bytes", "vmem_bytes"):
            cap = getattr(info, name, None)
            if cap:
                return int(cap)
    except Exception:
        pass
    return 64 * 1024 * 1024  # conservative: v7x has 64 MiB per TensorCore


def reward_model_kernel(x_ref, w1_ref, b1_ref, w2_ref, b2_ref, w3_ref, b3_ref,
                        o_ref):
    """One batch tile: x (TB, Dp) -> rewards as a lane-dense (1, TB) row."""
    # layer 1: MXU matmul (bf16/f32 operands), f32 accumulation; bias + ReLU on
    # the VPU in f32.
    h = jnp.dot(x_ref[...], w1_ref[...], preferred_element_type=jnp.float32)
    h = jnp.maximum(h + b1_ref[...], 0.0)
    # layer 2
    h = jnp.dot(h.astype(w2_ref.dtype), w2_ref[...],
                preferred_element_type=jnp.float32)
    h = jnp.maximum(h + b2_ref[...], 0.0)
    # layer 3 (layer_size -> 1): single M=1 MXU push contracting over Hp:
    # (1, Hp) . (TB, Hp)^T -> (1, TB). Result is lane-dense (full-width vst)
    # with no XLU transpose and no materialized (TB, Hp) product.
    r = jax.lax.dot_general(
        w3_ref[...], h.astype(w3_ref.dtype),
        dimension_numbers=(((1,), (1,)), ((), ())),
        preferred_element_type=jnp.float32)
    o_ref[...] = (r + b3_ref[0, 0]).astype(o_ref.dtype)   # scalar bias (SMEM)


def reward_model_forward(x, params, *, block_batch=1024,
                         mxu_dtype=jnp.bfloat16):
    """x: (batch, state_dim) -> (batch, 1) float32 rewards."""
    w1, b1, w2, b2, w3, b3 = params
    batch, state_dim = x.shape
    layer_size = w1.shape[1]
    mxu_bytes = jnp.dtype(mxu_dtype).itemsize

    # Feature dims padded to full vreg lanes.
    Dp = _round_up(state_dim, LANE)
    Hp = _round_up(layer_size, LANE)

    vmem_cap = _vmem_capacity_bytes()
    vmem_limit = int(min(vmem_cap * 3 // 4, 100 * 1024 * 1024))

    # ---- batch tile selection ------------------------------------------------
    if batch <= LANE:
        # Tiny-batch path: one tile of round_up(batch, 8) rows; block == full
        # array, so the (8, 128) rule is satisfied without padding to 128 rows.
        TB = _round_up(max(batch, 1), SUBLANE)
    else:
        tb_align = 2 * LANE  # 256: full MXU pass on v6e/v7x, 2x128 on v5e
        block_batch = max(int(block_batch), tb_align)
        TB = min(_round_up(block_batch, tb_align), _round_up(batch, tb_align))
        # Generation-aware VMEM budget: double-buffered weights/biases plus the
        # per-row cost of the x tile (double-buffered), output row and live h.
        budget = vmem_cap * 3 // 4
        weight_bytes = 2 * ((Dp * Hp + Hp * Hp + Hp) * mxu_bytes + 2 * Hp * 4)
        per_row = 2 * Dp * mxu_bytes + 2 * 4 + 3 * Hp * 4
        tb_budget = ((budget - weight_bytes) // per_row) // tb_align * tb_align
        TB = max(tb_align, min(TB, max(tb_align, tb_budget)))

    Bp = _round_up(batch, TB)
    num_tiles = Bp // TB

    # ---- pad / cast only when needed (no extra HBM round trip otherwise) -----
    xp = x if x.dtype == mxu_dtype else x.astype(mxu_dtype)
    if (Bp - batch) or (Dp - state_dim):
        xp = jnp.pad(xp, ((0, Bp - batch), (0, Dp - state_dim)))

    def _pad2(a, r, c):
        return jnp.pad(a, ((0, r), (0, c))) if (r or c) else a

    w1p = _pad2(w1, Dp - state_dim, Hp - layer_size).astype(mxu_dtype)
    b1p = _pad2(b1, 0, Hp - layer_size)
    w2p = _pad2(w2, Hp - layer_size, Hp - layer_size).astype(mxu_dtype)
    b2p = _pad2(b2, 0, Hp - layer_size)
    w3_row = _pad2(w3.T, 0, Hp - layer_size).astype(mxu_dtype)   # (1, Hp)
    b3s = jnp.asarray(b3, jnp.float32).reshape(1, 1)             # SMEM scalar

    out = pl.pallas_call(
        reward_model_kernel,
        out_shape=jax.ShapeDtypeStruct((1, Bp), jnp.float32),
        grid=(num_tiles,),
        in_specs=[
            pl.BlockSpec((TB, Dp), lambda i: (i, 0)),          # x tile
            pl.BlockSpec((Dp, Hp), lambda i: (0, 0)),          # w1 (resident)
            pl.BlockSpec((1, Hp), lambda i: (0, 0)),           # b1
            pl.BlockSpec((Hp, Hp), lambda i: (0, 0)),          # w2 (resident)
            pl.BlockSpec((1, Hp), lambda i: (0, 0)),           # b2
            pl.BlockSpec((1, Hp), lambda i: (0, 0)),           # w3 as a row
            pl.BlockSpec(memory_space=pltpu.MemorySpace.SMEM), # b3 scalar
        ],
        out_specs=pl.BlockSpec((1, TB), lambda i: (0, i)),     # lane-dense rewards
        compiler_params=pltpu.CompilerParams(
            dimension_semantics=("parallel",),
            vmem_limit_bytes=vmem_limit,
        ),
    )(xp, w1p, b1p, w2p, b2p, w3_row, b3s)

    return out[0, :batch].reshape(batch, 1).astype(jnp.float32)


def init_params(key, state_dim, layer_size):
    """Deterministic synthetic init matching nn.Linear shapes.

    PyTorch stores W_pt as (out, in); we store the transpose (in, out)."""
    ks = jax.random.split(key, 6)

    def lin(kw, kb, fan_in, fan_out):
        bound = 1.0 / jnp.sqrt(fan_in)
        w = jax.random.uniform(kw, (fan_in, fan_out), jnp.float32,
                               minval=-bound, maxval=bound)
        b = jax.random.uniform(kb, (1, fan_out), jnp.float32,
                               minval=-bound, maxval=bound)
        return w, b

    w1, b1 = lin(ks[0], ks[1], state_dim, layer_size)
    w2, b2 = lin(ks[2], ks[3], layer_size, layer_size)
    w3, b3 = lin(ks[4], ks[5], layer_size, 1)
    return (w1, b1, w2, b2, w3, b3)


def reference_forward(x, params):
    w1, b1, w2, b2, w3, b3 = params
    h = jnp.maximum(x @ w1 + b1, 0.0)
    h = jnp.maximum(h @ w2 + b2, 0.0)
    return h @ w3 + b3


if __name__ == "__main__":
    batch, state_dim, layer_size = 8, 32, 64

    key = jax.random.PRNGKey(0)
    kx, kp = jax.random.split(key)
    x = jax.random.normal(kx, (batch, state_dim), jnp.float32)
    params = init_params(kp, state_dim, layer_size)

    ref = reference_forward(x, params)

    # Default: bf16-fed MXU, f32 accumulate / bias / ReLU (tiny-batch path).
    out = jax.block_until_ready(reward_model_forward(x, params))
    assert out.shape == (batch, 1), out.shape
    err = float(jnp.max(jnp.abs(out - ref)))
    assert jnp.allclose(out, ref, atol=5e-2, rtol=5e-2), err

    # f32-operand parity/debug path (near-f32; MXU runs f32 as bf16 passes).
    out_f32 = jax.block_until_ready(
        reward_model_forward(x, params, mxu_dtype=jnp.float32))
    err_f32 = float(jnp.max(jnp.abs(out_f32 - ref)))
    assert jnp.allclose(out_f32, ref, atol=2e-3, rtol=2e-3), err_f32

    # Exercise the multi-tile batch grid (uneven batch, several tiles).
    big_batch = 640
    xb = jax.random.normal(kx, (big_batch, state_dim), jnp.float32)
    refb = reference_forward(xb, params)
    outb = jax.block_until_ready(
        reward_model_forward(xb, params, block_batch=256))
    assert outb.shape == (big_batch, 1), outb.shape
    errb = float(jnp.max(jnp.abs(outb - refb)))
    assert jnp.allclose(outb, refb, atol=1e-1, rtol=1e-1), errb

    print("KERNEL_OK")
</pallas_src>

<mosaic_0001>
module attributes {stable_mosaic.version = 11 : i64} {
  func.func @reward_model_kernel(%arg0: i32, %arg1: memref<8x128xbf16, #tpu.memory_space<vmem>>, %arg2: memref<128x128xbf16, #tpu.memory_space<vmem>>, %arg3: memref<1x128xf32, #tpu.memory_space<vmem>>, %arg4: memref<128x128xbf16, #tpu.memory_space<vmem>>, %arg5: memref<1x128xf32, #tpu.memory_space<vmem>>, %arg6: memref<1x128xbf16, #tpu.memory_space<vmem>>, %arg7: memref<1x1xf32, #tpu.memory_space<smem>>, %arg8: memref<1x8xf32, #tpu.memory_space<vmem>>) attributes {dimension_semantics = [#tpu.dimension_semantics<parallel>], iteration_bounds = array<i64: 1>, scalar_prefetch = 0 : i64, scratch_operands = 0 : i64, tpu.core_type = #tpu.core_type<tc>, window_params = [{transform_indices = @transform_0, window_bounds = array<i64: 8, 128>}, {pipeline_mode = #tpu.pipeline_mode<synchronous>, transform_indices = @transform_1, window_bounds = array<i64: 128, 128>}, {pipeline_mode = #tpu.pipeline_mode<synchronous>, transform_indices = @transform_2, window_bounds = array<i64: 1, 128>}, {pipeline_mode = #tpu.pipeline_mode<synchronous>, transform_indices = @transform_3, window_bounds = array<i64: 128, 128>}, {pipeline_mode = #tpu.pipeline_mode<synchronous>, transform_indices = @transform_4, window_bounds = array<i64: 1, 128>}, {pipeline_mode = #tpu.pipeline_mode<synchronous>, transform_indices = @transform_5, window_bounds = array<i64: 1, 128>}, {transform_indices = @transform_6, window_bounds = array<i64: 1, 1>}, {transform_indices = @transform_7, window_bounds = array<i64: 1, 8>}]} {
    %c0 = arith.constant 0 : index
    %c0_0 = arith.constant 0 : index
    %0 = vector.load %arg1[%c0, %c0_0] : memref<8x128xbf16, #tpu.memory_space<vmem>>, vector<8x128xbf16>
    %c0_1 = arith.constant 0 : index
    %c0_2 = arith.constant 0 : index
    %1 = vector.load %arg2[%c0_1, %c0_2] : memref<128x128xbf16, #tpu.memory_space<vmem>>, vector<128x128xbf16>
    %cst = arith.constant dense<0.000000e+00> : vector<8x128xf32>
    %2 = tpu.matmul %0, %1, %cst {dimension_numbers = #tpu.dot_dimension_numbers<[1], [0], [0], [1], [0, 0, 1, 1], [], []>} : vector<8x128xbf16>, vector<128x128xbf16>, vector<8x128xf32> -> vector<8x128xf32>
    %c0_3 = arith.constant 0 : index
    %c0_4 = arith.constant 0 : index
    %3 = vector.load %arg3[%c0_3, %c0_4] : memref<1x128xf32, #tpu.memory_space<vmem>>, vector<1x128xf32>
    %4 = vector.broadcast %3 : vector<1x128xf32> to vector<8x128xf32>
    %5 = arith.addf %2, %4 : vector<8x128xf32>
    %cst_5 = arith.constant 0.000000e+00 : f32
    %6 = vector.broadcast %cst_5 : f32 to vector<8x128xf32>
    %7 = arith.maximumf %5, %6 : vector<8x128xf32>
    %8 = arith.truncf %7 : vector<8x128xf32> to vector<8x128xbf16>
    %c0_6 = arith.constant 0 : index
    %c0_7 = arith.constant 0 : index
    %9 = vector.load %arg4[%c0_6, %c0_7] : memref<128x128xbf16, #tpu.memory_space<vmem>>, vector<128x128xbf16>
    %cst_8 = arith.constant dense<0.000000e+00> : vector<8x128xf32>
    %10 = tpu.matmul %8, %9, %cst_8 {dimension_numbers = #tpu.dot_dimension_numbers<[1], [0], [0], [1], [0, 0, 1, 1], [], []>} : vector<8x128xbf16>, vector<128x128xbf16>, vector<8x128xf32> -> vector<8x128xf32>
    %c0_9 = arith.constant 0 : index
    %c0_10 = arith.constant 0 : index
    %11 = vector.load %arg5[%c0_9, %c0_10] : memref<1x128xf32, #tpu.memory_space<vmem>>, vector<1x128xf32>
    %12 = vector.broadcast %11 : vector<1x128xf32> to vector<8x128xf32>
    %13 = arith.addf %10, %12 : vector<8x128xf32>
    %cst_11 = arith.constant 0.000000e+00 : f32
    %14 = vector.broadcast %cst_11 : f32 to vector<8x128xf32>
    %15 = arith.maximumf %13, %14 : vector<8x128xf32>
    %c0_12 = arith.constant 0 : index
    %c0_13 = arith.constant 0 : index
    %16 = vector.load %arg6[%c0_12, %c0_13] : memref<1x128xbf16, #tpu.memory_space<vmem>>, vector<1x128xbf16>
    %17 = arith.truncf %15 : vector<8x128xf32> to vector<8x128xbf16>
    %cst_14 = arith.constant dense<0.000000e+00> : vector<1x8xf32>
    %18 = tpu.matmul %16, %17, %cst_14 {dimension_numbers = #tpu.dot_dimension_numbers<[1], [1], [0], [0], [0, 0, 1, 0], [], []>} : vector<1x128xbf16>, vector<8x128xbf16>, vector<1x8xf32> -> vector<1x8xf32>
    %c0_15 = arith.constant 0 : index
    %c0_16 = arith.constant 0 : index
    %19 = memref.load %arg7[%c0_15, %c0_16] : memref<1x1xf32, #tpu.memory_space<smem>>
    %20 = vector.broadcast %19 : f32 to vector<1x8xf32>
    %21 = arith.addf %18, %20 : vector<1x8xf32>
    %c0_17 = arith.constant 0 : index
    %c0_18 = arith.constant 0 : index
    %22 = vector.load %arg8[%c0_17, %c0_18] : memref<1x8xf32, #tpu.memory_space<vmem>>, vector<1x8xf32>
    tpu.vector_store %arg8[%c0_17, %c0_18], %21 {strides = array<i32>} : memref<1x8xf32, #tpu.memory_space<vmem>>, vector<1x8xf32>,
    return
  }
  func.func @transform_0(%arg0: i32) -> (i32, i32) {
    %c0_i32 = arith.constant 0 : i32
    %c0_i32_0 = arith.constant 0 : i32
    return %arg0, %c0_i32 : i32, i32
  }
  func.func @transform_1(%arg0: i32) -> (i32, i32) {
    %c0_i32 = arith.constant 0 : i32
    %c0_i32_0 = arith.constant 0 : i32
    %c0_i32_1 = arith.constant 0 : i32
    return %c0_i32, %c0_i32_0 : i32, i32
  }
  func.func @transform_2(%arg0: i32) -> (i32, i32) {
    %c0_i32 = arith.constant 0 : i32
    %c0_i32_0 = arith.constant 0 : i32
    %c0_i32_1 = arith.constant 0 : i32
    return %c0_i32, %c0_i32_0 : i32, i32
  }
  func.func @transform_3(%arg0: i32) -> (i32, i32) {
    %c0_i32 = arith.constant 0 : i32
    %c0_i32_0 = arith.constant 0 : i32
    %c0_i32_1 = arith.constant 0 : i32
    return %c0_i32, %c0_i32_0 : i32, i32
  }
  func.func @transform_4(%arg0: i32) -> (i32, i32) {
    %c0_i32 = arith.constant 0 : i32
    %c0_i32_0 = arith.constant 0 : i32
    %c0_i32_1 = arith.constant 0 : i32
    return %c0_i32, %c0_i32_0 : i32, i32
  }
  func.func @transform_5(%arg0: i32) -> (i32, i32) {
    %c0_i32 = arith.constant 0 : i32
    %c0_i32_0 = arith.constant 0 : i32
    %c0_i32_1 = arith.constant 0 : i32
    return %c0_i32, %c0_i32_0 : i32, i32
  }
  func.func @transform_6(%arg0: i32) -> (i32, i32) {
    %c0_i32 = arith.constant 0 : i32
    %c0_i32_0 = arith.constant 0 : i32
    %c0_i32_1 = arith.constant 0 : i32
    return %c0_i32, %c0_i32_0 : i32, i32
  }
  func.func @transform_7(%arg0: i32) -> (i32, i32) {
    %c0_i32 = arith.constant 0 : i32
    %c0_i32_0 = arith.constant 0 : i32
    return %c0_i32, %arg0 : i32, i32
  }
}

</mosaic_0001>

<llo_original>
// kernel: tpu_custom_call.1
$region0: #{tpu_custom_call.1}
  #allocation0 [shape = 'u32[]', space=smem, size = 0x4, offset = 0x4, fixed_abs, tag = 'smem constant byte address 0x4 - core index']
  #allocation1 [shape = 'u32[144,128]{1,0:T(1,128)}', space=vmem, size = 0x12000, scoped, tag = 'internal scratch']
  #allocation2 [shape = 'f32[1,1]{1,0:T(1,128)S(6)}', space=smem, size = 0x200, scoped, tag = 'scoped memory for tpu_custom_call.1']
  %s0 = inlined_call_operand.hbm [shape: bf16[8,128], index: 0, kind: input, shape index: {}]
  %s1 = inlined_call_operand.hbm [shape: bf16[128,128], index: 1, kind: input, shape index: {}]
  %s2 = inlined_call_operand.vmem [shape: f32[1,128], index: 2, kind: input, shape index: {}]
  %s3 = inlined_call_operand.hbm [shape: bf16[128,128], index: 3, kind: input, shape index: {}]
  %s4 = inlined_call_operand.vmem [shape: f32[1,128], index: 4, kind: input, shape index: {}]
  %s5 = inlined_call_operand.vmem [shape: bf16[1,128], index: 5, kind: input, shape index: {}]
  %s6 = inlined_call_operand.<no memory space> [shape: f32[1,1], index: 6, kind: input, shape index: {}]
  %s7 = inlined_call_operand.hbm [shape: f32[1,8], index: 7, kind: output, shape index: {}]
  %s8 = sld [smem:[#allocation0]]
  $region50: #{tpu_custom_call.1} parent=0
    _
  %s10 = ssub.s32 1, %s8
  %s11 = scalar_select 0, %s10, %s8
  %12 = sst [smem:[#allocation2]] %s6
  $region1: #{tpu_custom_call.1} parent=0
    #allocation3 [shape = 'u8[2048]{0}', space=vmem, size = 0x800, scoped, tag = 'input window, operand 0, single buffered']
    #allocation4 [shape = 's32[1]{0}', space=sflag, size = 0x4, scoped, tag = 'scoped memory for tpu_custom_call.1']
    #allocation5 [shape = 's32[1]{0}', space=sflag, size = 0x4, scoped, tag = 'scoped memory for tpu_custom_call.1']
    #allocation6 [shape = 'u8[32768]{0}', space=vmem, size = 0x8000, scoped, tag = 'input window, operand 1, single buffered']
    #allocation7 [shape = 's32[1]{0}', space=sflag, size = 0x4, scoped, tag = 'scoped memory for tpu_custom_call.1']
    #allocation8 [shape = 'u8[32768]{0}', space=vmem, size = 0x8000, scoped, tag = 'input window, operand 3, single buffered']
    #allocation9 [shape = 'u8[512]{0}', space=vmem, size = 0x400, scoped, tag = 'output window, operand 0, single buffered']
    %13 = vsyncpa [#allocation4], 0
    %14 = vsyncpa [#allocation7], 0
    %15 = vsyncpa [#allocation5], 0
    // Predicated region
    $region2: #{tpu_custom_call.1} parent=1 // pred_check
      _
    $region3: #{tpu_custom_call.1} parent=1 // pred_check_branch
      %17 = sbr.rel (0) target = $region5
    $region4: #{tpu_custom_call.1} parent=1 // pred_region
      %s19 = ssub.s32 64, 64
      %20 = vsyncadd [#allocation4], %s19
      %s22 = sshll.u32 [#allocation3], 4
      %s23 = int_to_ptr.vmem [resolvable:$true] %s22
      %25 = dma.hbm_to_vmem [thread:$0]  %s0, 64, %s23, [#allocation4]
    $region5: #{tpu_custom_call.1} parent=1 // pred_fallthru
      _
    // Predicated region
    $region6: #{tpu_custom_call.1} parent=1 // pred_check
      _
    $region7: #{tpu_custom_call.1} parent=1 // pred_check_branch
      %27 = sbr.rel (0) target = $region9
    $region8: #{tpu_custom_call.1} parent=1 // pred_region
      %s29 = ssub.s32 1024, 1024
      %30 = vsyncadd [#allocation7], %s29
      %s31 = sshll.u32 [#allocation6], 4
      %s32 = int_to_ptr.vmem [resolvable:$true] %s31
      %37 = dma.hbm_to_vmem [thread:$0]  %s1, 1024, %s32, [#allocation7], 64, 64, 4
    $region9: #{tpu_custom_call.1} parent=1 // pred_fallthru
      _
    // Predicated region
    $region10: #{tpu_custom_call.1} parent=1 // pred_check
      _
    $region11: #{tpu_custom_call.1} parent=1 // pred_check_branch
      %39 = sbr.rel (0) target = $region13
    $region12: #{tpu_custom_call.1} parent=1 // pred_region
      _
    $region13: #{tpu_custom_call.1} parent=1 // pred_fallthru
      _
    // Predicated region
    $region14: #{tpu_custom_call.1} parent=1 // pred_check
      _
    $region15: #{tpu_custom_call.1} parent=1 // pred_check_branch
      %41 = sbr.rel (0) target = $region17
    $region16: #{tpu_custom_call.1} parent=1 // pred_region
      %s43 = ssub.s32 1024, 1024
      %44 = vsyncadd [#allocation7], %s43
      %s45 = sshll.u32 [#allocation8], 4
      %s46 = int_to_ptr.vmem [resolvable:$true] %s45
      %51 = dma.hbm_to_vmem [thread:$0]  %s3, 1024, %s46, [#allocation7], 64, 64, 4
    $region17: #{tpu_custom_call.1} parent=1 // pred_fallthru
      _
    // Predicated region
    $region18: #{tpu_custom_call.1} parent=1 // pred_check
      _
    $region19: #{tpu_custom_call.1} parent=1 // pred_check_branch
      %53 = sbr.rel (0) target = $region21
    $region20: #{tpu_custom_call.1} parent=1 // pred_region
      _
    $region21: #{tpu_custom_call.1} parent=1 // pred_fallthru
      _
    // Predicated region
    $region22: #{tpu_custom_call.1} parent=1 // pred_check
      _
    $region23: #{tpu_custom_call.1} parent=1 // pred_check_branch
      %55 = sbr.rel (0) target = $region25
    $region24: #{tpu_custom_call.1} parent=1 // pred_region
      _
    $region25: #{tpu_custom_call.1} parent=1 // pred_fallthru
      _
    // Predicated region
    $region26: #{tpu_custom_call.1} parent=1 // pred_check
      _
    $region27: #{tpu_custom_call.1} parent=1 // pred_check_branch
      %57 = sbr.rel (0) target = $region29
    $region28: #{tpu_custom_call.1} parent=1 // pred_region
      _
    $region29: #{tpu_custom_call.1} parent=1 // pred_fallthru
      _
    // Predicated region
    $region30: #{tpu_custom_call.1} parent=1 // pred_check
      _
    $region31: #{tpu_custom_call.1} parent=1 // pred_check_branch
      %59 = sbr.rel (0) target = $region33
    $region32: #{tpu_custom_call.1} parent=1 // pred_region
      %60 = dma.done [#allocation4], 64
    $region33: #{tpu_custom_call.1} parent=1 // pred_fallthru
      _
    // Predicated region
    $region34: #{tpu_custom_call.1} parent=1 // pred_check
      _
    $region35: #{tpu_custom_call.1} parent=1 // pred_check_branch
      %62 = sbr.rel (0) target = $region37
    $region36: #{tpu_custom_call.1} parent=1 // pred_region
      %63 = dma.done [#allocation7], 1024
    $region37: #{tpu_custom_call.1} parent=1 // pred_fallthru
      _
    // Predicated region
    $region38: #{tpu_custom_call.1} parent=1 // pred_check
      _
    $region39: #{tpu_custom_call.1} parent=1 // pred_check_branch
      %65 = sbr.rel (0) target = $region41
    $region40: #{tpu_custom_call.1} parent=1 // pred_region
      %66 = dma.done [#allocation7], 1024
    $region41: #{tpu_custom_call.1} parent=1 // pred_fallthru
      _
    %v68 = vld [vmem:[#allocation3] sm:$0xf]
    %v69 = vld [vmem:[#allocation6] sm:$0xf]
    %v70 = vld [vmem:[#allocation6 + $0x4] sm:$0xf]
    %v71 = vld [vmem:[#allocation6 + $0x8] sm:$0xf]
    %v72 = vld [vmem:[#allocation6 + $0xc] sm:$0xf]
    %v73 = vld [vmem:[#allocation6 + $0x10] sm:$0xf]
    %v74 = vld [vmem:[#allocation6 + $0x14] sm:$0xf]
    %v75 = vld [vmem:[#allocation6 + $0x18] sm:$0xf]
    %v76 = vld [vmem:[#allocation6 + $0x1c] sm:$0xf]
    %v77 = vld [vmem:[#allocation6 + $0x20] sm:$0xf]
    %v78 = vld [vmem:[#allocation6 + $0x24] sm:$0xf]
    %v79 = vld [vmem:[#allocation6 + $0x28] sm:$0xf]
    %v80 = vld [vmem:[#allocation6 + $0x2c] sm:$0xf]
    %v81 = vld [vmem:[#allocation6 + $0x30] sm:$0xf]
    %v82 = vld [vmem:[#allocation6 + $0x34] sm:$0xf]
    %v83 = vld [vmem:[#allocation6 + $0x38] sm:$0xf]
    %v84 = vld [vmem:[#allocation6 + $0x3c] sm:$0xf]
    %v85 = vld [vmem:[%s2] sm:$0x1]
    %v87 = vlaneseq
    %v88 = vshrl.u32 %v87, 7
    %v89 = vsub.s32 0, %v88
    %v90 = vrot.slane %v85, %v89
    %v108 = vunpack.c.l.b16 %v69
    %v109 = vunpack.c.l.b16 %v70
    %v110 = vunpack.c.l.b16 %v71
    %v111 = vunpack.c.l.b16 %v72
    %v112 = vunpack.c.l.b16 %v73
    %v113 = vunpack.c.l.b16 %v74
    %v114 = vunpack.c.l.b16 %v75
    %v115 = vunpack.c.l.b16 %v76
    %v116 = vunpack.c.l.b16 %v77
    %v117 = vunpack.c.l.b16 %v78
    %v118 = vunpack.c.l.b16 %v79
    %v119 = vunpack.c.l.b16 %v80
    %v120 = vunpack.c.l.b16 %v81
    %v121 = vunpack.c.l.b16 %v82
    %v122 = vunpack.c.l.b16 %v83
    %v123 = vunpack.c.l.b16 %v84
    %v124 = vpack.c.b16 %v109, %v108
    %v125 = vpack.c.b16 %v111, %v110
    %v126 = vpack.c.b16 %v113, %v112
    %v127 = vpack.c.b16 %v115, %v114
    %v128 = vpack.c.b16 %v117, %v116
    %v129 = vpack.c.b16 %v119, %v118
    %v130 = vpack.c.b16 %v121, %v120
    %v131 = vpack.c.b16 %v123, %v122
    %140 = vmatprep.subr.bf16.mxu0 0
    %141 = vmatpush1.bf16.msra.mxu0 %v124
    %142 = vmatprep.subr.bf16.mxu0 0
    %143 = vmatpush1.bf16.msra.mxu0 %v125
    %144 = vmatprep.subr.bf16.mxu0 0
    %145 = vmatpush1.bf16.msra.mxu0 %v126
    %146 = vmatprep.subr.bf16.mxu0 0
    %147 = vmatpush1.bf16.msra.mxu0 %v127
    %148 = vmatprep.subr.bf16.mxu0 0
    %149 = vmatpush1.bf16.msra.mxu0 %v128
    %150 = vmatprep.subr.bf16.mxu0 0
    %151 = vmatpush1.bf16.msra.mxu0 %v129
    %152 = vmatprep.subr.bf16.mxu0 0
    %153 = vmatpush1.bf16.msra.mxu0 %v130
    %154 = vmatprep.subr.bf16.mxu0 0
    %155 = vmatpush1.bf16.msra.mxu0 %v131
    %156 = vmatprep.subr.bf16.mxu0 0
    %157 = vmatpush1.bf16.msra.mxu0 0
    %158 = vmatprep.subr.bf16.mxu0 0
    %159 = vmatpush1.bf16.msra.mxu0 0
    %160 = vmatprep.subr.bf16.mxu0 0
    %161 = vmatpush1.bf16.msra.mxu0 0
    %162 = vmatprep.subr.bf16.mxu0 0
    %163 = vmatpush1.bf16.msra.mxu0 0
    %164 = vmatprep.subr.bf16.mxu0 0
    %165 = vmatpush1.bf16.msra.mxu0 0
    %166 = vmatprep.subr.bf16.mxu0 0
    %167 = vmatpush1.bf16.msra.mxu0 0
    %168 = vmatprep.subr.bf16.mxu0 0
    %169 = vmatpush1.bf16.msra.mxu0 0
    %170 = vmatprep.subr.bf16.mxu0 0
    %171 = vmatpush1.bf16.msra.mxu0 0
    %172 = vmatprep.mubr.bf16.mxu0 0
    %173 = vmatmul.mubr.bf16.gmra.mrb[0].mxu0 %v68
    %v174 = vpop.f32.mrb[0].mxu0
    %v175 = vadd.f32 %v90, %v174
    %v176 = vpop.f32.mrb[0].mxu0
    %v177 = vpop.f32.mrb[0].mxu0
    %v178 = vpop.f32.mrb[0].mxu0
    %179 = vdwg.mxu0
    %v180 = vmax.f32 %v175, 0.0
    %v181 = vpack.c.bf16 %v180, %v180
    %v182 = vld [vmem:[#allocation8] sm:$0xf]
    %v183 = vld [vmem:[#allocation8 + $0x4] sm:$0xf]
    %v184 = vld [vmem:[#allocation8 + $0x8] sm:$0xf]
    %v185 = vld [vmem:[#allocation8 + $0xc] sm:$0xf]
    %v186 = vld [vmem:[#allocation8 + $0x10] sm:$0xf]
    %v187 = vld [vmem:[#allocation8 + $0x14] sm:$0xf]
    %v188 = vld [vmem:[#allocation8 + $0x18] sm:$0xf]
    %v189 = vld [vmem:[#allocation8 + $0x1c] sm:$0xf]
    %v190 = vld [vmem:[#allocation8 + $0x20] sm:$0xf]
    %v191 = vld [vmem:[#allocation8 + $0x24] sm:$0xf]
    %v192 = vld [vmem:[#allocation8 + $0x28] sm:$0xf]
    %v193 = vld [vmem:[#allocation8 + $0x2c] sm:$0xf]
    %v194 = vld [vmem:[#allocation8 + $0x30] sm:$0xf]
    %v195 = vld [vmem:[#allocation8 + $0x34] sm:$0xf]
    %v196 = vld [vmem:[#allocation8 + $0x38] sm:$0xf]
    %v197 = vld [vmem:[#allocation8 + $0x3c] sm:$0xf]
    %v198 = vld [vmem:[%s4] sm:$0x1]
    %v200 = vlaneseq
    %v201 = vshrl.u32 %v200, 7
    %v202 = vsub.s32 0, %v201
    %v203 = vrot.slane %v198, %v202
    %v221 = vunpack.c.l.b16 %v182
    %v222 = vunpack.c.l.b16 %v183
    %v223 = vunpack.c.l.b16 %v184
    %v224 = vunpack.c.l.b16 %v185
    %v225 = vunpack.c.l.b16 %v186
    %v226 = vunpack.c.l.b16 %v187
    %v227 = vunpack.c.l.b16 %v188
    %v228 = vunpack.c.l.b16 %v189
    %v229 = vunpack.c.l.b16 %v190
    %v230 = vunpack.c.l.b16 %v191
    %v231 = vunpack.c.l.b16 %v192
    %v232 = vunpack.c.l.b16 %v193
    %v233 = vunpack.c.l.b16 %v194
    %v234 = vunpack.c.l.b16 %v195
    %v235 = vunpack.c.l.b16 %v196
    %v236 = vunpack.c.l.b16 %v197
    %v237 = vpack.c.b16 %v222, %v221
    %v238 = vpack.c.b16 %v224, %v223
    %v239 = vpack.c.b16 %v226, %v225
    %v240 = vpack.c.b16 %v228, %v227
    %v241 = vpack.c.b16 %v230, %v229
    %v242 = vpack.c.b16 %v232, %v231
    %v243 = vpack.c.b16 %v234, %v233
    %v244 = vpack.c.b16 %v236, %v235
    %253 = vmatprep.subr.bf16.mxu0 0
    %254 = vmatpush1.bf16.msra.mxu0 %v237
    %255 = vmatprep.subr.bf16.mxu0 0
    %256 = vmatpush1.bf16.msra.mxu0 %v238
    %257 = vmatprep.subr.bf16.mxu0 0
    %258 = vmatpush1.bf16.msra.mxu0 %v239
    %259 = vmatprep.subr.bf16.mxu0 0
    %260 = vmatpush1.bf16.msra.mxu0 %v240
    %261 = vmatprep.subr.bf16.mxu0 0
    %262 = vmatpush1.bf16.msra.mxu0 %v241
    %263 = vmatprep.subr.bf16.mxu0 0
    %264 = vmatpush1.bf16.msra.mxu0 %v242
    %265 = vmatprep.subr.bf16.mxu0 0
    %266 = vmatpush1.bf16.msra.mxu0 %v243
    %267 = vmatprep.subr.bf16.mxu0 0
    %268 = vmatpush1.bf16.msra.mxu0 %v244
    %269 = vmatprep.subr.bf16.mxu0 0
    %270 = vmatpush1.bf16.msra.mxu0 0
    %271 = vmatprep.subr.bf16.mxu0 0
    %272 = vmatpush1.bf16.msra.mxu0 0
    %273 = vmatprep.subr.bf16.mxu0 0
    %274 = vmatpush1.bf16.msra.mxu0 0
    %275 = vmatprep.subr.bf16.mxu0 0
    %276 = vmatpush1.bf16.msra.mxu0 0
    %277 = vmatprep.subr.bf16.mxu0 0
    %278 = vmatpush1.bf16.msra.mxu0 0
    %279 = vmatprep.subr.bf16.mxu0 0
    %280 = vmatpush1.bf16.msra.mxu0 0
    %281 = vmatprep.subr.bf16.mxu0 0
    %282 = vmatpush1.bf16.msra.mxu0 0
    %283 = vmatprep.subr.bf16.mxu0 0
    %284 = vmatpush1.bf16.msra.mxu0 0
    %285 = vmatprep.mubr.bf16.mxu0 0
    %286 = vmatmul.mubr.bf16.gmra.mrb[0].mxu0 %v181
    %v287 = vpop.f32.mrb[0].mxu0
    %v288 = vadd.f32 %v203, %v287
    %v289 = vpop.f32.mrb[0].mxu0
    %v290 = vpop.f32.mrb[0].mxu0
    %v291 = vpop.f32.mrb[0].mxu0
    %292 = vdwg.mxu0
    %v293 = vmax.f32 %v288, 0.0
    %v294 = vld [vmem:[%s5] sm:$0x1]
    %v295 = vpack.c.bf16 %v293, %v293
    %s296 = sld [smem:[#allocation2]]
    %v297 = vstv %s296
    %298 = vmatprep.subr.bf16.mxu0 0
    %299 = vmatpush1.bf16.xpose.msra.mxu0 %v295
    %300 = vmatprep.subr.bf16.mxu0 0
    %301 = vmatpush1.bf16.xpose.msra.mxu0 0
    %302 = vmatprep.subr.bf16.mxu0 0
    %303 = vmatpush1.bf16.xpose.msra.mxu0 0
    %304 = vmatprep.subr.bf16.mxu0 0
    %305 = vmatpush1.bf16.xpose.msra.mxu0 0
    %306 = vmatprep.subr.bf16.mxu0 0
    %307 = vmatpush1.bf16.xpose.msra.mxu0 0
    %308 = vmatprep.subr.bf16.mxu0 0
    %309 = vmatpush1.bf16.xpose.msra.mxu0 0
    %310 = vmatprep.subr.bf16.mxu0 0
    %311 = vmatpush1.bf16.xpose.msra.mxu0 0
    %312 = vmatprep.subr.bf16.mxu0 0
    %313 = vmatpush1.bf16.xpose.msra.mxu0 0
    %314 = vmatprep.subr.bf16.mxu0 0
    %315 = vmatpush1.bf16.xpose.msra.mxu0 0
    %316 = vmatprep.subr.bf16.mxu0 0
    %317 = vmatpush1.bf16.xpose.msra.mxu0 0
    %318 = vmatprep.subr.bf16.mxu0 0
    %319 = vmatpush1.bf16.xpose.msra.mxu0 0
    %320 = vmatprep.subr.bf16.mxu0 0
    %321 = vmatpush1.bf16.xpose.msra.mxu0 0
    %322 = vmatprep.subr.bf16.mxu0 0
    %323 = vmatpush1.bf16.xpose.msra.mxu0 0
    %324 = vmatprep.subr.bf16.mxu0 0
    %325 = vmatpush1.bf16.xpose.msra.mxu0 0
    %326 = vmatprep.subr.bf16.mxu0 0
    %327 = vmatpush1.bf16.xpose.msra.mxu0 0
    %328 = vmatprep.subr.bf16.mxu0 0
    %329 = vmatpush1.bf16.xpose.msra.mxu0 0
    %330 = vmatprep.mubr.bf16.mxu0 0
    %331 = vmatmul.mubr.bf16.gmra.mrb[0].mxu0 %v294
    %v332 = vpop.f32.mrb[0].mxu0
    %v333 = vadd.f32 %v297, %v332
    %v334 = vpop.f32.mrb[0].mxu0
    %v335 = vpop.f32.mrb[0].mxu0
    %v336 = vpop.f32.mrb[0].mxu0
    %337 = vdwg.mxu0
    %vm338 = vcmask 57344
    %339 = vst.msk [vmem:[#allocation9] sm:$0x1] %vm338, %v333
    // Predicated region
    $region42: #{tpu_custom_call.1} parent=1 // pred_check
      _
    $region43: #{tpu_custom_call.1} parent=1 // pred_check_branch
      %341 = sbr.rel (0) target = $region45
    $region44: #{tpu_custom_call.1} parent=1 // pred_region
      %s343 = ssub.s32 16, 16
      %344 = vsyncadd [#allocation5], %s343
      %s346 = sshll.u32 [#allocation9], 4
      %s347 = int_to_ptr.vmem [resolvable:$true] %s346
      %349 = dma.vmem_to_hbm [thread:$0]  %s347, 16, %s7, [#allocation5]
    $region45: #{tpu_custom_call.1} parent=1 // pred_fallthru
      _
    // Predicated region
    $region46: #{tpu_custom_call.1} parent=1 // pred_check
      _
    $region47: #{tpu_custom_call.1} parent=1 // pred_check_branch
      %351 = sbr.rel (0) target = $region49
    $region48: #{tpu_custom_call.1} parent=1 // pred_region
      %352 = dma.done [#allocation5], 16
    $region49: #{tpu_custom_call.1} parent=1 // pred_fallthru
      _
    %353 = vsyncpa [#allocation4], 1
    %354 = vsyncpa [#allocation7], 1
    %355 = vsyncpa [#allocation5], 1

</llo_original>
